<compile_context>
chip_gen: v6e
topology: v6e:2x2x1
jax: 0.10.0
libtpu: 0.0.40
codegen_flags: <defaults>
</compile_context>

<pallas_src>
import jax
import jax.numpy as jnp
from jax.experimental import pallas as pl
from jax.experimental.pallas import tpu as pltpu

_LANE = 128
_SUBLANE = 8


def _mask_modal_kernel(mask_ref, fetch_ref, x_ref, o_ref):
    # mask_ref / fetch_ref: SMEM int32 (num_tiles,) scalar prefetch.  fetch_ref
    # is consumed only by the input index_map (read-skip); unused in the body.
    # x_ref / o_ref: (tile_rows, 128) auto-pipelined VMEM tiles.
    del fetch_ref
    m = mask_ref[pl.program_id(0)]

    @pl.when(m != 0)
    def _copy():
        o_ref[...] = x_ref[...]

    @pl.when(m == 0)
    def _zero():
        o_ref[...] = jnp.zeros_like(o_ref)


def _choose_divisor_tile_rows(rows, sub, target_rows):
    """Largest tile_rows <= target_rows dividing `rows` (or the whole slab).

    Prefers multiples of the packed-sublane count `sub`.  Returns None when no
    reasonable divisor exists (caller falls back to the padding path).
    """
    if rows <= target_rows:
        return rows  # whole slab as one tile (block == full array dims)
    if rows % sub == 0:
        q = rows // sub
        for d in range(min(q, max(target_rows // sub, 1)), 0, -1):
            if q % d == 0:
                return d * sub
    # Any divisor is correct (block equals the full second-to-last dim), but
    # keep it >= sub so stores stay dense.
    for d in range(min(rows, target_rows), sub - 1, -1):
        if rows % d == 0:
            return d
    return None


def mask_modal(x, mask, *, target_tile_bytes=2 * 1024 * 1024):
    """x: (B, K, C, H, W, Z); mask: (B, K) bool. Returns (B, K*C, H, W, Z)."""
    B, K, C, H, W, Z = x.shape
    N = B * K
    P = C * H * W * Z
    itemsize = jnp.dtype(x.dtype).itemsize

    # Packed-sublane multiple for this dtype (8 f32, 16 bf16/f16, 32 int8/fp8).
    sub = max(_SUBLANE, _SUBLANE * (4 // itemsize))

    # Rows per tile: ~target_tile_bytes, multiple of the packed sublane count.
    target_rows = max(sub, (target_tile_bytes // (_LANE * itemsize)) // sub * sub)

    rows = pl.cdiv(P, _LANE)
    tile_rows = None
    if P % _LANE == 0:
        tile_rows = _choose_divisor_tile_rows(rows, sub, target_rows)

    if tile_rows is not None:
        # Clean split: free reshape, no padding, no post-kernel slice.
        tiles_per_slab = rows // tile_rows
        p_pad = P
        x_tiles = x.reshape(N * tiles_per_slab, tile_rows, _LANE)
    else:
        # TODO(synk): ragged P % 128 tails take a host-side pad + slice (one
        # extra HBM pass each); real model shapes are powers of two, divide
        # cleanly, and never hit this branch.
        rows_up = pl.cdiv(rows, sub) * sub
        tile_rows = min(target_rows, rows_up)
        tiles_per_slab = pl.cdiv(rows_up, tile_rows)
        p_pad = tiles_per_slab * tile_rows * _LANE
        x_flat = jnp.pad(x.reshape(N, P), ((0, 0), (0, p_pad - P)))
        x_tiles = x_flat.reshape(N * tiles_per_slab, tile_rows, _LANE)

    num_tiles = N * tiles_per_slab

    # Per-tile mask, plus the index of the most recent mask-on tile: masked-off
    # steps re-use the previously fetched block so their input DMA dedups away.
    mask_tile = jnp.repeat(jnp.asarray(mask).astype(jnp.int32).reshape(N),
                           tiles_per_slab)
    idx = jnp.arange(num_tiles, dtype=jnp.int32)
    fetch_idx = jax.lax.cummax(jnp.where(mask_tile != 0, idx, 0), axis=0)

    out = pl.pallas_call(
        _mask_modal_kernel,
        out_shape=jax.ShapeDtypeStruct((num_tiles, tile_rows, _LANE), x.dtype),
        grid_spec=pltpu.PrefetchScalarGridSpec(
            num_scalar_prefetch=2,
            grid=(num_tiles,),
            in_specs=[
                pl.BlockSpec((None, tile_rows, _LANE),
                             lambda s, m_ref, f_ref: (f_ref[s], 0, 0)),
            ],
            out_specs=pl.BlockSpec((None, tile_rows, _LANE),
                                   lambda s, m_ref, f_ref: (s, 0, 0)),
        ),
        compiler_params=pltpu.CompilerParams(
            dimension_semantics=("parallel",),
        ),
    )(mask_tile, fetch_idx, x_tiles)

    if p_pad == P:
        return out.reshape(B, K * C, H, W, Z)
    out_flat = out.reshape(N, p_pad)[:, :P]
    return out_flat.reshape(B, K * C, H, W, Z)


def _reference(x, mask):
    B, K, C, H, W, Z = x.shape
    m = jnp.asarray(mask)[:, :, None, None, None, None]
    return jnp.where(m, x, jnp.zeros_like(x)).reshape(B, K * C, H, W, Z)


if __name__ == "__main__":
    key = jax.random.PRNGKey(0)
    k1, k2, k3, k4 = jax.random.split(key, 4)

    # Deterministic mask covering both on and off modalities.
    mask = jnp.array([[True, False, True, False],
                      [False, True, True, False]])

    # Test 1: small slab (P = 256 -> 2 rows of 128 lanes, whole-slab tile, f32).
    B, K, C, H, W, Z = 2, 4, 2, 4, 4, 8
    x1 = jax.random.normal(k1, (B, K, C, H, W, Z), dtype=jnp.float32)
    out1 = jax.block_until_ready(mask_modal(x1, mask))
    assert out1.shape == (B, K * C, H, W, Z)
    assert jnp.array_equal(out1, _reference(x1, mask)), "mismatch (test 1)"

    # Test 2: multi-tile-per-slab split (tiny tile target), f32, no padding.
    x2 = jax.random.normal(k2, (2, 4, 4, 8, 8, 8), dtype=jnp.float32)
    out2 = jax.block_until_ready(mask_modal(x2, mask, target_tile_bytes=4096))
    assert out2.shape == (2, 4 * 4, 8, 8, 8)
    assert jnp.array_equal(out2, _reference(x2, mask)), "mismatch (test 2)"

    # Test 3: bfloat16 (16-row packed sublane tiles), multi-tile split.
    x3 = jax.random.normal(k3, (2, 4, 8, 8, 8, 8), dtype=jnp.bfloat16)
    out3 = jax.block_until_ready(mask_modal(x3, mask, target_tile_bytes=4096))
    assert out3.shape == (2, 4 * 8, 8, 8, 8)
    assert jnp.array_equal(out3, _reference(x3, mask)), "mismatch (test 3)"

    # Test 4: ragged P % 128 != 0 exercises the padding fallback path.
    x4 = jax.random.normal(k4, (2, 4, 3, 4, 4, 4), dtype=jnp.float32)
    out4 = jax.block_until_ready(mask_modal(x4, mask))
    assert out4.shape == (2, 4 * 3, 4, 4, 4)
    assert jnp.array_equal(out4, _reference(x4, mask)), "mismatch (test 4)"

    print("KERNEL_OK")
</pallas_src>

<mosaic_0001>
module attributes {stable_mosaic.version = 11 : i64} {
  func.func @_mask_modal_kernel(%arg0: i32, %arg1: memref<8xi32, #tpu.memory_space<smem>>, %arg2: memref<8xi32, #tpu.memory_space<smem>>, %arg3: memref<1x2x128xf32, #tpu.memory_space<vmem>>, %arg4: memref<1x2x128xf32, #tpu.memory_space<vmem>>) attributes {dimension_semantics = [#tpu.dimension_semantics<parallel>], iteration_bounds = array<i64: 8>, scalar_prefetch = 2 : i64, scratch_operands = 0 : i64, tpu.core_type = #tpu.core_type<tc>, window_params = [{transform_indices = @transform_0, window_bounds = array<i64: 1, 2, 128>}, {transform_indices = @transform_1, window_bounds = array<i64: 1, 2, 128>}]} {
    %0 = arith.index_cast %arg0 : i32 to index
    %1 = memref.load %arg1[%0] : memref<8xi32, #tpu.memory_space<smem>>
    %c0_i32 = arith.constant 0 : i32
    %2 = arith.cmpi ne, %1, %c0_i32 : i32
    %3 = arith.extui %2 : i1 to i32
    %c0_i32_0 = arith.constant 0 : i32
    %4 = arith.cmpi ne, %3, %c0_i32_0 : i32
    scf.if %4 {
      %c0 = arith.constant 0 : index
      %c0_3 = arith.constant 0 : index
      %c0_4 = arith.constant 0 : index
      %8 = vector.load %arg3[%c0, %c0_3, %c0_4] : memref<1x2x128xf32, #tpu.memory_space<vmem>>, vector<1x2x128xf32>
      %9 = vector.shape_cast %8 : vector<1x2x128xf32> to vector<2x128xf32>
      %c0_5 = arith.constant 0 : index
      %c0_6 = arith.constant 0 : index
      %c0_7 = arith.constant 0 : index
      %10 = vector.load %arg4[%c0_5, %c0_6, %c0_7] : memref<1x2x128xf32, #tpu.memory_space<vmem>>, vector<1x2x128xf32>
      %11 = vector.shape_cast %10 : vector<1x2x128xf32> to vector<2x128xf32>
      %12 = vector.shape_cast %9 : vector<2x128xf32> to vector<1x2x128xf32>
      tpu.vector_store %arg4[%c0_5, %c0_6, %c0_7], %12 {strides = array<i32>} : memref<1x2x128xf32, #tpu.memory_space<vmem>>, vector<1x2x128xf32>,
    } else {
    }
    %c0_i32_1 = arith.constant 0 : i32
    %5 = arith.cmpi eq, %1, %c0_i32_1 : i32
    %6 = arith.extui %5 : i1 to i32
    %c0_i32_2 = arith.constant 0 : i32
    %7 = arith.cmpi ne, %6, %c0_i32_2 : i32
    scf.if %7 {
      %cst = arith.constant 0.000000e+00 : f32
      %8 = vector.broadcast %cst : f32 to vector<2x128xf32>
      %c0 = arith.constant 0 : index
      %c0_3 = arith.constant 0 : index
      %c0_4 = arith.constant 0 : index
      %9 = vector.load %arg4[%c0, %c0_3, %c0_4] : memref<1x2x128xf32, #tpu.memory_space<vmem>>, vector<1x2x128xf32>
      %10 = vector.shape_cast %9 : vector<1x2x128xf32> to vector<2x128xf32>
      %11 = vector.shape_cast %8 : vector<2x128xf32> to vector<1x2x128xf32>
      tpu.vector_store %arg4[%c0, %c0_3, %c0_4], %11 {strides = array<i32>} : memref<1x2x128xf32, #tpu.memory_space<vmem>>, vector<1x2x128xf32>,
    } else {
    }
    return
  }
  func.func @transform_0(%arg0: i32, %arg1: memref<8xi32, #tpu.memory_space<smem>>, %arg2: memref<8xi32, #tpu.memory_space<smem>>) -> (i32, i32, i32) {
    %0 = arith.index_cast %arg0 : i32 to index
    %1 = memref.load %arg2[%0] : memref<8xi32, #tpu.memory_space<smem>>
    %c0_i32 = arith.constant 0 : i32
    %c0_i32_0 = arith.constant 0 : i32
    %c0_i32_1 = arith.constant 0 : i32
    return %1, %c0_i32, %c0_i32_0 : i32, i32, i32
  }
  func.func @transform_1(%arg0: i32, %arg1: memref<8xi32, #tpu.memory_space<smem>>, %arg2: memref<8xi32, #tpu.memory_space<smem>>) -> (i32, i32, i32) {
    %c0_i32 = arith.constant 0 : i32
    %c0_i32_0 = arith.constant 0 : i32
    %c0_i32_1 = arith.constant 0 : i32
    return %arg0, %c0_i32, %c0_i32_0 : i32, i32, i32
  }
}

</mosaic_0001>

<llo_original>
// kernel: tpu_custom_call.1
$region0: #{tpu_custom_call.1}
  #allocation0 [shape = 'u32[]', space=smem, size = 0x4, offset = 0x4, fixed_abs, tag = 'smem constant byte address 0x4 - core index']
  #allocation1 [shape = 'u32[144,128]{1,0:T(1,128)}', space=vmem, size = 0x12000, scoped, tag = 'internal scratch']
  #allocation2 [shape = 's32[1]{0}', space=sflag, size = 0x4, scoped, tag = 'scoped memory for tpu_custom_call.1']
  #allocation3 [shape = 'u8[512]{0}', space=smem, size = 0x200, scoped, tag = 'prefetched SMEM operand 0']
  #allocation4 [shape = 'u8[512]{0}', space=smem, size = 0x200, scoped, tag = 'prefetched SMEM operand 1']
  %s0 = inlined_call_operand.hbm [shape: s32[8], index: 0, kind: input, shape index: {}]
  %s1 = inlined_call_operand.vmem [shape: s32[8], index: 1, kind: input, shape index: {}]
  %s2 = inlined_call_operand.hbm [shape: f32[8,2,128], index: 2, kind: input, shape index: {}]
  %s3 = inlined_call_operand.hbm [shape: f32[8,2,128], index: 3, kind: output, shape index: {}]
  %s4 = sld [smem:[#allocation0]]
  $region49: #{tpu_custom_call.1} parent=0
    _
  %s6 = ssub.s32 1, %s4
  %s7 = scalar_select 0, %s6, %s4
  %9 = dma.hbm_to_smem %s0, 16, [#allocation3], [#allocation2]
  %s10 = sshll.u32 %s1, 4
  %s11 = int_to_ptr.vmem [resolvable:$true] %s10
  %13 = dma.vmem_to_smem %s11, 16, [#allocation4], [#allocation2]
  %14 = dma.done [#allocation2], 32
  %15 = sfence
  $region1: #{tpu_custom_call.1} parent=0
    #allocation5 [shape = 'u8[2048]{0}', space=vmem, size = 0x800, scoped, tag = 'input window, operand 2']
    #allocation6 [shape = 's32[2]{0}', space=sflag, size = 0x8, scoped, tag = 'scoped memory for tpu_custom_call.1']
    #allocation7 [shape = 's32[2]{0}', space=sflag, size = 0x8, scoped, tag = 'scoped memory for tpu_custom_call.1']
    #allocation8 [shape = 'u8[2048]{0}', space=vmem, size = 0x800, scoped, tag = 'output window, operand 0']
    %16 = vsyncpa [#allocation6], 0
    %s17 = scalar_lea.sflag [#allocation6], 1
    %18 = vsyncpa %s17, 0
    %19 = vsyncpa [#allocation7], 0
    %s20 = scalar_lea.sflag [#allocation7], 1
    %21 = vsyncpa %s20, 0
    loop: start=0, step=1, limit=10
    $region2: #{tpu_custom_call.1} parent=1 // loop_pre_header
      _
    $region3: #{tpu_custom_call.1} parent=1 // loop_header
      %s23 = sphi 0, %s27
      %p24 = scmp.ge.s32.totalorder %s23, 10
      %s35 = sphi 0, %s37
      %s38 = sphi 0, %s35
      %s39 = sphi 0, %s38
      %s55 = sphi 0, %s39
      %s61 = sphi 0, %s63
      %s64 = sphi 0, %s61
      %s65 = sphi 0, %s64
      %s81 = sphi 0, %s65
    $region4: #{tpu_custom_call.1} parent=1 // loop_header_branch
      %26 = sbr.rel (%p24) target = $region8
    $region5: #{tpu_custom_call.1} parent=1 // loop_body
      %s28 = ssub.s32 %s23, 1
      %s29 = ssub.s32 %s23, 2
      %s30 = sadd.s32 %s23, 1
      %s31 = sld [smem:[#allocation4 + %s23]]
      %s32 = sld [smem:[#allocation4 + %s30]]
      %s33 = ssub.s32 %s31, %s32
      %p34 = scmp.eq.s32.totalorder %s33, 0
      %s36 = sadd.s32 %s35, 1
      %s37 = scalar_select %p34, %s35, %s36
      %p40 = pneg %p34
      %p41 = scmp.eq.s32.totalorder %s23, 7
      %p42 = por %p40, %p41
      %p43 = scmp.ne.s32.totalorder %s35, %s38
      %p44 = scmp.eq.s32.totalorder %s23, 0
      %p45 = por %p43, %p44
      %p46 = scmp.ne.s32.totalorder %s35, %s38
      %p47 = scmp.eq.s32.totalorder %s28, 7
      %p48 = por %p46, %p47
      %p49 = scmp.ne.s32.totalorder %s38, %s39
      %p50 = scmp.eq.s32.totalorder %s28, 0
      %p51 = por %p49, %p50
      %p52 = scmp.ne.s32.totalorder %s38, %s39
      %p53 = scmp.eq.s32.totalorder %s29, 7
      %p54 = por %p52, %p53
      %p56 = scmp.ne.s32.totalorder %s39, %s55
      %p57 = scmp.eq.s32.totalorder %s29, 0
      %p58 = por %p56, %p57
      %s59 = ssub.s32 %s23, %s30
      %p60 = scmp.eq.s32.totalorder %s59, 0
      %s62 = sadd.s32 %s61, 1
      %s63 = scalar_select %p60, %s61, %s62
      %p66 = pneg %p60
      %p67 = scmp.eq.s32.totalorder %s23, 7
      %p68 = por %p66, %p67
      %p69 = scmp.ne.s32.totalorder %s61, %s64
      %p70 = scmp.eq.s32.totalorder %s23, 0
      %p71 = por %p69, %p70
      %p72 = scmp.ne.s32.totalorder %s61, %s64
      %p73 = scmp.eq.s32.totalorder %s28, 7
      %p74 = por %p72, %p73
      %p75 = scmp.ne.s32.totalorder %s64, %s65
      %p76 = scmp.eq.s32.totalorder %s28, 0
      %p77 = por %p75, %p76
      %p78 = scmp.ne.s32.totalorder %s64, %s65
      %p79 = scmp.eq.s32.totalorder %s29, 7
      %p80 = por %p78, %p79
      %p82 = scmp.ne.s32.totalorder %s65, %s81
      %p83 = scmp.eq.s32.totalorder %s29, 0
      %p84 = por %p82, %p83
      %p85 = scmp.le.s32.totalorder 1, %s23
      %p86 = scmp.lt.s32.totalorder %s23, 9
      %p87 = pnand %p85, %p86
      %p88 = pneg %p87
      // Predicated region
      $region9: #{tpu_custom_call.1} parent=5 // pred_check
        _
      $region10: #{tpu_custom_call.1} parent=5 // pred_check_branch
        %90 = sbr.rel (%p87) target = $region12
      $region11: #{tpu_custom_call.1} parent=5 // pred_region
        %s91 = ssub.s32 %s23, 1
      $region12: #{tpu_custom_call.1} parent=5 // pred_fallthru
        _
      %p92 = scmp.lt.s32.totalorder %s23, 8
      // Predicated region
      $region13: #{tpu_custom_call.1} parent=5 // pred_check
        %p93 = pneg %p92
      $region14: #{tpu_custom_call.1} parent=5 // pred_check_branch
        %95 = sbr.rel (%p93) target = $region16
      $region15: #{tpu_custom_call.1} parent=5 // pred_region
        // Predicated region
        $region17: #{tpu_custom_call.1} parent=15 // pred_check
          %p96 = pneg %p45
        $region18: #{tpu_custom_call.1} parent=15 // pred_check_branch
          %98 = sbr.rel (%p96) target = $region20
        $region19: #{tpu_custom_call.1} parent=15 // pred_region
          %s99 = sand.u32 %s35, 1
          %s100 = scalar_lea.sflag [#allocation6], %s99
          %s101 = sand.u32 %s35, 1
          %s102 = smul.addr %s101, 2
          %s103 = scalar_lea.vmem [#allocation5], %s102
          %s104 = sld [smem:[#allocation4 + %s23]]
          %s106 = ssub.s32 32, 32
          %107 = vsyncadd %s100, %s106
          %s108 = smul.addr %s104, 32
          %s109 = scalar_lea.hbm %s2, %s108
          %s111 = sshll.u32 %s103, 4
          %s112 = int_to_ptr.vmem [resolvable:$true] %s111
          %114 = dma.hbm_to_vmem [thread:$0]  %s109, 32, %s112, %s100
        $region20: #{tpu_custom_call.1} parent=15 // pred_fallthru
          _
      $region16: #{tpu_custom_call.1} parent=5 // pred_fallthru
        _
      %p115 = scmp.le.s32.totalorder 1, %s23
      %p116 = scmp.lt.s32.totalorder %s23, 9
      %p117 = pnand %p115, %p116
      %p118 = pneg %p117
      // Predicated region
      $region21: #{tpu_custom_call.1} parent=5 // pred_check
        _
      $region22: #{tpu_custom_call.1} parent=5 // pred_check_branch
        %120 = sbr.rel (%p117) target = $region24
      $region23: #{tpu_custom_call.1} parent=5 // pred_region
        %s121 = ssub.s32 %s23, 1
        %s122 = sand.u32 %s38, 1
        %s123 = scalar_lea.sflag [#allocation6], %s122
        %s124 = sand.u32 %s38, 1
        %s125 = smul.addr %s124, 2
        %s126 = scalar_lea.vmem [#allocation5], %s125
        // Predicated region
        $region25: #{tpu_custom_call.1} parent=23 // pred_check
          %p127 = pneg %p51
        $region26: #{tpu_custom_call.1} parent=23 // pred_check_branch
          %129 = sbr.rel (%p127) target = $region28
        $region27: #{tpu_custom_call.1} parent=23 // pred_region
          %130 = dma.done %s123, 32
        $region28: #{tpu_custom_call.1} parent=23 // pred_fallthru
          _
        %s131 = sand.u32 %s38, 1
        %s132 = scalar_lea.sflag [#allocation6], %s131
        %s133 = sand.u32 %s38, 1
        %s134 = smul.addr %s133, 2
        %s135 = scalar_lea.vmem [#allocation5], %s134
        %p136 = pneg %p51
        %p137 = pneg %p48
        %p138 = pneg %p77
        %p139 = pneg %p74
        %s140 = sand.u32 %s64, 1
        %s141 = scalar_lea.sflag [#allocation7], %s140
        %s142 = sand.u32 %s64, 1
        %s143 = smul.addr %s142, 2
        %s144 = scalar_lea.vmem [#allocation8], %s143
        %s145 = sld [smem:[#allocation4 + %s28]]
        %s146 = sld [smem:[#allocation3 + %s28]]
        %p147 = scmp.ne.s32.totalorder %s146, 0
        // Predicated region
        $region29: #{tpu_custom_call.1} parent=23 // pred_check
          %p148 = pneg %p147
        $region30: #{tpu_custom_call.1} parent=23 // pred_check_branch
          %150 = sbr.rel (%p148) target = $region32
        $region31: #{tpu_custom_call.1} parent=23 // pred_region
          %v151 = vld [vmem:[%s126] sm:$0x3]
          %152 = vst [vmem:[%s144] sm:$0x3] %v151
        $region32: #{tpu_custom_call.1} parent=23 // pred_fallthru
          _
        %p153 = scmp.eq.s32.totalorder %s146, 0
        // Predicated region
        $region33: #{tpu_custom_call.1} parent=23 // pred_check
          %p154 = pneg %p153
        $region34: #{tpu_custom_call.1} parent=23 // pred_check_branch
          %156 = sbr.rel (%p154) target = $region36
        $region35: #{tpu_custom_call.1} parent=23 // pred_region
          %157 = vst [vmem:[%s144] sm:$0x3] 0.0
        $region36: #{tpu_custom_call.1} parent=23 // pred_fallthru
          _
        %s158 = sand.u32 %s64, 1
        %s159 = scalar_lea.sflag [#allocation7], %s158
        %s160 = sand.u32 %s64, 1
        %s161 = smul.addr %s160, 2
        %s162 = scalar_lea.vmem [#allocation8], %s161
        // Predicated region
        $region37: #{tpu_custom_call.1} parent=23 // pred_check
          %p163 = pneg %p74
        $region38: #{tpu_custom_call.1} parent=23 // pred_check_branch
          %165 = sbr.rel (%p163) target = $region40
        $region39: #{tpu_custom_call.1} parent=23 // pred_region
          %s167 = ssub.s32 32, 32
          %168 = vsyncadd %s159, %s167
          %s169 = smul.addr %s28, 32
          %s170 = scalar_lea.hbm %s3, %s169
          %s172 = sshll.u32 %s162, 4
          %s173 = int_to_ptr.vmem [resolvable:$true] %s172
          %175 = dma.vmem_to_hbm [thread:$0]  %s173, 32, %s170, %s159
        $region40: #{tpu_custom_call.1} parent=23 // pred_fallthru
          _
      $region24: #{tpu_custom_call.1} parent=5 // pred_fallthru
        _
      %p176 = scmp.le.s32.totalorder 2, %s23
      // Predicated region
      $region41: #{tpu_custom_call.1} parent=5 // pred_check
        %p177 = pneg %p176
      $region42: #{tpu_custom_call.1} parent=5 // pred_check_branch
        %179 = sbr.rel (%p177) target = $region44
      $region43: #{tpu_custom_call.1} parent=5 // pred_region
        %s180 = ssub.s32 %s23, 2
        // Predicated region
        $region45: #{tpu_custom_call.1} parent=43 // pred_check
          %p181 = pneg %p80
        $region46: #{tpu_custom_call.1} parent=43 // pred_check_branch
          %183 = sbr.rel (%p181) target = $region48
        $region47: #{tpu_custom_call.1} parent=43 // pred_region
          %s184 = sand.u32 %s65, 1
          %s185 = scalar_lea.sflag [#allocation7], %s184
          %s186 = sand.u32 %s65, 1
          %s187 = smul.addr %s186, 2
          %s188 = scalar_lea.vmem [#allocation8], %s187
          %189 = dma.done %s185, 32
        $region48: #{tpu_custom_call.1} parent=43 // pred_fallthru
          _
      $region44: #{tpu_custom_call.1} parent=5 // pred_fallthru
        _
    $region6: #{tpu_custom_call.1} parent=1 // loop_footer
      %s27 = sadd.s32 1, %s23
    $region7: #{tpu_custom_call.1} parent=1 // loop_footer_branch
      %22 = sbr.rel target = $region3
    $region8: #{tpu_custom_call.1} parent=1 // loop_exit
      _
    %190 = vsyncpa [#allocation6], 1
    %s191 = scalar_lea.sflag [#allocation6], 1
    %192 = vsyncpa %s191, 1
    %193 = vsyncpa [#allocation7], 1
    %s194 = scalar_lea.sflag [#allocation7], 1
    %195 = vsyncpa %s194, 1

</llo_original>
